<compile_context>
chip_gen: v7x
topology: tpu7x:2x2x1
jax: 0.10.0
libtpu: 0.0.40
codegen_flags: <defaults>
</compile_context>

<pallas_src>
import functools

import jax
import jax.numpy as jnp
from jax.experimental import pallas as pl
from jax.experimental.pallas import tpu as pltpu


def _conv3x3_kernel(x_ref, w_ref, b_ref, o_ref, *, H, relu):
    """3 lane-dense matmuls (one per vertical tap) over a block of whole images.

    x_ref : (R, W*Cin)           rows = (batch, h), NHWC row-flattened
    w_ref : (3, W*Cin, W*Cout)   folded conv weights, indexed by vertical tap
    b_ref : (1, W*Cout)          bias tiled across W
    o_ref : (R, W*Cout)          lane-dense output rows
    """
    X = x_ref[...]                                      # (R, W*Cin)
    R = X.shape[0]
    rows = jax.lax.broadcasted_iota(jnp.int32, X.shape, 0)
    zero_row = jnp.zeros((1, X.shape[1]), dtype=X.dtype)

    # Height halo (pad=1 in H): row i sees row i-1 ("up") and row i+1 ("down");
    # rows that would cross an image boundary inside the block are zeroed.
    shift_dn = jnp.concatenate([zero_row, X[:-1, :]], axis=0)   # row i <- row i-1
    shift_up = jnp.concatenate([X[1:, :], zero_row], axis=0)    # row i <- row i+1
    up = jnp.where(rows % H == 0, 0.0, shift_dn)                # x[n, h-1]
    down = jnp.where(rows % H == H - 1, 0.0, shift_up)          # x[n, h+1]

    acc = jnp.dot(up, w_ref[0], preferred_element_type=jnp.float32)
    acc = acc + jnp.dot(X, w_ref[1], preferred_element_type=jnp.float32)
    acc = acc + jnp.dot(down, w_ref[2], preferred_element_type=jnp.float32)

    acc = acc + b_ref[...]
    if relu:
        acc = jnp.maximum(acc, 0.0)
    o_ref[...] = acc.astype(o_ref.dtype)


def conv_forward(x_nchw, weight, bias, *, relu=True, batch_block=None):
    """Equivalent of Conv(inp_dim, out_dim, kernel_size=3).forward.

    x_nchw : (N, Cin, H, W) float32
    weight : (Cout, Cin, 3, 3)   (PyTorch conv weight layout)
    bias   : (Cout,)
    returns: (N, Cout, H, W)
    """
    N, Cin, H, W = x_nchw.shape
    Cout = weight.shape[0]
    assert weight.shape == (Cout, Cin, 3, 3)

    # Whole batch in one grid step by default; on v7x set batch_block = N // 2
    # so the "parallel" grid axis shards the batch across the two TensorCores.
    NB = N if batch_block is None else batch_block
    assert N % NB == 0 and NB >= 1
    R = NB * H

    # Activations: NCHW -> (N*H, W*Cin). Single layout op; no jnp.pad (the H
    # halo is made in-kernel, the W halo is folded into the weight matrices).
    x2d = (jnp.transpose(x_nchw, (0, 2, 3, 1))
           .reshape(N * H, W * Cin)
           .astype(jnp.float32))

    # Fold horizontal taps + width padding into per-vertical-tap matrices:
    #   w_mat[dh, (w_in, ci), (w, co)] = weight[co, ci, dh, w_in - w + 1]
    #                                    (zero where w_in - w + 1 not in [0,3))
    # Built once per call from the weights (cacheable in a real model).
    w_hwio = jnp.transpose(weight, (2, 3, 1, 0)).astype(jnp.float32)  # (3,3,Cin,Cout)
    dw = jnp.arange(W)[:, None] - jnp.arange(W)[None, :] + 1          # (w_in, w)
    valid = (dw >= 0) & (dw <= 2)
    taps = w_hwio[:, jnp.clip(dw, 0, 2), :, :]                        # (3,W,W,Cin,Cout)
    taps = jnp.where(valid[None, :, :, None, None], taps, 0.0)
    w_mat = (jnp.transpose(taps, (0, 1, 3, 2, 4))                     # (3,W,Cin,W,Cout)
             .reshape(3, W * Cin, W * Cout))

    # Bias tiled once into the lane-dense (., W*Cout) output layout.
    b_row = jnp.tile(bias.astype(jnp.float32), (W,)).reshape(1, W * Cout)

    kernel = functools.partial(_conv3x3_kernel, H=H, relu=relu)

    out2d = pl.pallas_call(
        kernel,
        out_shape=jax.ShapeDtypeStruct((N * H, W * Cout), jnp.float32),
        grid_spec=pltpu.PrefetchScalarGridSpec(
            num_scalar_prefetch=0,
            grid=(N // NB,),
            in_specs=[
                pl.BlockSpec((R, W * Cin), lambda i: (i, 0)),
                pl.BlockSpec((3, W * Cin, W * Cout), lambda i: (0, 0, 0)),
                pl.BlockSpec((1, W * Cout), lambda i: (0, 0)),
            ],
            out_specs=pl.BlockSpec((R, W * Cout), lambda i: (i, 0)),
        ),
        compiler_params=pltpu.CompilerParams(
            dimension_semantics=("parallel",)),
    )(x2d, w_mat, b_row)

    # (N*H, W*Cout) -> (N, H, W, Cout) -> NCHW  (row-major reshape is free).
    return jnp.transpose(out2d.reshape(N, H, W, Cout), (0, 3, 1, 2))


def reference_conv(x_nchw, weight, bias, *, relu=True):
    """Pure-JAX reference (lax conv) for correctness checking."""
    out = jax.lax.conv_general_dilated(
        x_nchw, weight,
        window_strides=(1, 1),
        padding=((1, 1), (1, 1)),
        dimension_numbers=("NCHW", "OIHW", "NCHW"))
    out = out + bias[None, :, None, None]
    if relu:
        out = jnp.maximum(out, 0.0)
    return out


if __name__ == "__main__":
    # Small shapes consistent with the module: inp_dim=4, out_dim=8, 16x16 images.
    N, Cin, Cout, H, W = 2, 4, 8, 16, 16

    key = jax.random.PRNGKey(0)
    kx, kw, kb = jax.random.split(key, 3)

    x = jax.random.normal(kx, (N, Cin, H, W), dtype=jnp.float32)
    fan_in = Cin * 3 * 3
    bound = 1.0 / (fan_in ** 0.5)
    weight = jax.random.uniform(kw, (Cout, Cin, 3, 3),
                                minval=-bound, maxval=bound, dtype=jnp.float32)
    bias = jax.random.uniform(kb, (Cout,),
                              minval=-bound, maxval=bound, dtype=jnp.float32)

    out = conv_forward(x, weight, bias, relu=True)
    out = jax.block_until_ready(out)

    ref = reference_conv(x, weight, bias, relu=True)
    assert out.shape == (N, Cout, H, W)
    assert jnp.allclose(out, ref, atol=1e-3, rtol=1e-3), "mismatch vs reference"

    print("KERNEL_OK")
</pallas_src>

<mosaic_0001>
module attributes {stable_mosaic.version = 11 : i64} {
  func.func @_conv3x3_kernel(%arg0: i32, %arg1: memref<32x64xf32, #tpu.memory_space<vmem>>, %arg2: memref<3x64x128xf32, #tpu.memory_space<vmem>>, %arg3: memref<1x128xf32, #tpu.memory_space<vmem>>, %arg4: memref<32x128xf32, #tpu.memory_space<vmem>>) attributes {dimension_semantics = [#tpu.dimension_semantics<parallel>], iteration_bounds = array<i64: 1>, scalar_prefetch = 0 : i64, scratch_operands = 0 : i64, tpu.core_type = #tpu.core_type<tc>, window_params = [{transform_indices = @transform_0, window_bounds = array<i64: 32, 64>}, {pipeline_mode = #tpu.pipeline_mode<synchronous>, transform_indices = @transform_1, window_bounds = array<i64: 3, 64, 128>}, {pipeline_mode = #tpu.pipeline_mode<synchronous>, transform_indices = @transform_2, window_bounds = array<i64: 1, 128>}, {transform_indices = @transform_3, window_bounds = array<i64: 32, 128>}]} {
    %c0 = arith.constant 0 : index
    %c0_0 = arith.constant 0 : index
    %0 = vector.load %arg1[%c0, %c0_0] : memref<32x64xf32, #tpu.memory_space<vmem>>, vector<32x64xf32>
    %1 = tpu.iota {dimensions = array<i32: 0>} : vector<32x64xi32>
    %cst = arith.constant 0.000000e+00 : f32
    %2 = vector.broadcast %cst : f32 to vector<1x64xf32>
    %3 = vector.extract_strided_slice %0 {offsets = [0, 0], sizes = [31, 64], strides = [1, 1]} : vector<32x64xf32> to vector<31x64xf32>
    %4 = tpu.concatenate %2, %3 in 0 : vector<1x64xf32>, vector<31x64xf32> -> vector<32x64xf32>
    %5 = vector.extract_strided_slice %0 {offsets = [1, 0], sizes = [31, 64], strides = [1, 1]} : vector<32x64xf32> to vector<31x64xf32>
    %6 = tpu.concatenate %5, %2 in 0 : vector<31x64xf32>, vector<1x64xf32> -> vector<32x64xf32>
    %c16_i32 = arith.constant 16 : i32
    %c0_i32 = arith.constant 0 : i32
    %7 = arith.cmpi eq, %c16_i32, %c0_i32 : i32
    %c1_i32 = arith.constant 1 : i32
    %8 = arith.select %7, %c1_i32, %c16_i32 : i32
    %9 = vector.broadcast %8 : i32 to vector<32x64xi32>
    %10 = arith.remsi %1, %9 : vector<32x64xi32>
    %c0_i32_1 = arith.constant 0 : i32
    %11 = vector.broadcast %c0_i32_1 : i32 to vector<32x64xi32>
    %12 = arith.cmpi ne, %10, %11 : vector<32x64xi32>
    %c0_i32_2 = arith.constant 0 : i32
    %13 = vector.broadcast %c0_i32_2 : i32 to vector<32x64xi32>
    %14 = arith.cmpi slt, %10, %13 : vector<32x64xi32>
    %c0_i32_3 = arith.constant 0 : i32
    %15 = arith.cmpi slt, %8, %c0_i32_3 : i32
    %16 = vector.broadcast %15 : i1 to vector<32x64xi1>
    %17 = vector.broadcast %16 : vector<32x64xi1> to vector<32x64xi1>
    %18 = arith.xori %14, %17 : vector<32x64xi1>
    %19 = arith.andi %18, %12 : vector<32x64xi1>
    %20 = vector.broadcast %8 : i32 to vector<32x64xi32>
    %21 = arith.addi %10, %20 : vector<32x64xi32>
    %22 = arith.select %19, %21, %10 : vector<32x64xi1>, vector<32x64xi32>
    %c0_i32_4 = arith.constant 0 : i32
    %23 = vector.broadcast %c0_i32_4 : i32 to vector<32x64xi32>
    %24 = arith.cmpi eq, %22, %23 : vector<32x64xi32>
    %cst_5 = arith.constant 0.000000e+00 : f32
    %25 = vector.broadcast %cst_5 : f32 to vector<32x64xf32>
    %26 = arith.select %24, %25, %4 : vector<32x64xi1>, vector<32x64xf32>
    %c16_i32_6 = arith.constant 16 : i32
    %c0_i32_7 = arith.constant 0 : i32
    %27 = arith.cmpi eq, %c16_i32_6, %c0_i32_7 : i32
    %c1_i32_8 = arith.constant 1 : i32
    %28 = arith.select %27, %c1_i32_8, %c16_i32_6 : i32
    %29 = vector.broadcast %28 : i32 to vector<32x64xi32>
    %30 = arith.remsi %1, %29 : vector<32x64xi32>
    %c0_i32_9 = arith.constant 0 : i32
    %31 = vector.broadcast %c0_i32_9 : i32 to vector<32x64xi32>
    %32 = arith.cmpi ne, %30, %31 : vector<32x64xi32>
    %c0_i32_10 = arith.constant 0 : i32
    %33 = vector.broadcast %c0_i32_10 : i32 to vector<32x64xi32>
    %34 = arith.cmpi slt, %30, %33 : vector<32x64xi32>
    %c0_i32_11 = arith.constant 0 : i32
    %35 = arith.cmpi slt, %28, %c0_i32_11 : i32
    %36 = vector.broadcast %35 : i1 to vector<32x64xi1>
    %37 = vector.broadcast %36 : vector<32x64xi1> to vector<32x64xi1>
    %38 = arith.xori %34, %37 : vector<32x64xi1>
    %39 = arith.andi %38, %32 : vector<32x64xi1>
    %40 = vector.broadcast %28 : i32 to vector<32x64xi32>
    %41 = arith.addi %30, %40 : vector<32x64xi32>
    %42 = arith.select %39, %41, %30 : vector<32x64xi1>, vector<32x64xi32>
    %c15_i32 = arith.constant 15 : i32
    %43 = vector.broadcast %c15_i32 : i32 to vector<32x64xi32>
    %44 = arith.cmpi eq, %42, %43 : vector<32x64xi32>
    %cst_12 = arith.constant 0.000000e+00 : f32
    %45 = vector.broadcast %cst_12 : f32 to vector<32x64xf32>
    %46 = arith.select %44, %45, %6 : vector<32x64xi1>, vector<32x64xf32>
    %c0_13 = arith.constant 0 : index
    %c0_14 = arith.constant 0 : index
    %c0_15 = arith.constant 0 : index
    %47 = vector.load %arg2[%c0_13, %c0_14, %c0_15] : memref<3x64x128xf32, #tpu.memory_space<vmem>>, vector<1x64x128xf32>
    %48 = vector.shape_cast %47 : vector<1x64x128xf32> to vector<64x128xf32>
    %cst_16 = arith.constant dense<0.000000e+00> : vector<32x128xf32>
    %49 = tpu.matmul %26, %48, %cst_16 {dimension_numbers = #tpu.dot_dimension_numbers<[1], [0], [0], [1], [0, 0, 1, 1], [], []>} : vector<32x64xf32>, vector<64x128xf32>, vector<32x128xf32> -> vector<32x128xf32>
    %c1 = arith.constant 1 : index
    %c0_17 = arith.constant 0 : index
    %c0_18 = arith.constant 0 : index
    %50 = vector.load %arg2[%c1, %c0_17, %c0_18] : memref<3x64x128xf32, #tpu.memory_space<vmem>>, vector<1x64x128xf32>
    %51 = vector.shape_cast %50 : vector<1x64x128xf32> to vector<64x128xf32>
    %cst_19 = arith.constant dense<0.000000e+00> : vector<32x128xf32>
    %52 = tpu.matmul %0, %51, %cst_19 {dimension_numbers = #tpu.dot_dimension_numbers<[1], [0], [0], [1], [0, 0, 1, 1], [], []>} : vector<32x64xf32>, vector<64x128xf32>, vector<32x128xf32> -> vector<32x128xf32>
    %53 = arith.addf %49, %52 : vector<32x128xf32>
    %c2 = arith.constant 2 : index
    %c0_20 = arith.constant 0 : index
    %c0_21 = arith.constant 0 : index
    %54 = vector.load %arg2[%c2, %c0_20, %c0_21] : memref<3x64x128xf32, #tpu.memory_space<vmem>>, vector<1x64x128xf32>
    %55 = vector.shape_cast %54 : vector<1x64x128xf32> to vector<64x128xf32>
    %cst_22 = arith.constant dense<0.000000e+00> : vector<32x128xf32>
    %56 = tpu.matmul %46, %55, %cst_22 {dimension_numbers = #tpu.dot_dimension_numbers<[1], [0], [0], [1], [0, 0, 1, 1], [], []>} : vector<32x64xf32>, vector<64x128xf32>, vector<32x128xf32> -> vector<32x128xf32>
    %57 = arith.addf %53, %56 : vector<32x128xf32>
    %c0_23 = arith.constant 0 : index
    %c0_24 = arith.constant 0 : index
    %58 = vector.load %arg3[%c0_23, %c0_24] : memref<1x128xf32, #tpu.memory_space<vmem>>, vector<1x128xf32>
    %59 = vector.broadcast %58 : vector<1x128xf32> to vector<32x128xf32>
    %60 = arith.addf %57, %59 : vector<32x128xf32>
    %cst_25 = arith.constant 0.000000e+00 : f32
    %61 = vector.broadcast %cst_25 : f32 to vector<32x128xf32>
    %62 = arith.maximumf %60, %61 : vector<32x128xf32>
    %c0_26 = arith.constant 0 : index
    %c0_27 = arith.constant 0 : index
    %63 = vector.load %arg4[%c0_26, %c0_27] : memref<32x128xf32, #tpu.memory_space<vmem>>, vector<32x128xf32>
    tpu.vector_store %arg4[%c0_26, %c0_27], %62 {strides = array<i32>} : memref<32x128xf32, #tpu.memory_space<vmem>>, vector<32x128xf32>,
    return
  }
  func.func @transform_0(%arg0: i32) -> (i32, i32) {
    %c0_i32 = arith.constant 0 : i32
    %c0_i32_0 = arith.constant 0 : i32
    return %arg0, %c0_i32 : i32, i32
  }
  func.func @transform_1(%arg0: i32) -> (i32, i32, i32) {
    %c0_i32 = arith.constant 0 : i32
    %c0_i32_0 = arith.constant 0 : i32
    %c0_i32_1 = arith.constant 0 : i32
    %c0_i32_2 = arith.constant 0 : i32
    return %c0_i32, %c0_i32_0, %c0_i32_1 : i32, i32, i32
  }
  func.func @transform_2(%arg0: i32) -> (i32, i32) {
    %c0_i32 = arith.constant 0 : i32
    %c0_i32_0 = arith.constant 0 : i32
    %c0_i32_1 = arith.constant 0 : i32
    return %c0_i32, %c0_i32_0 : i32, i32
  }
  func.func @transform_3(%arg0: i32) -> (i32, i32) {
    %c0_i32 = arith.constant 0 : i32
    %c0_i32_0 = arith.constant 0 : i32
    return %arg0, %c0_i32 : i32, i32
  }
}

</mosaic_0001>

<llo_original>
// kernel: tpu_custom_call.1
$region0: #{tpu_custom_call.1}
  #allocation0 [shape = 'u32[]', space=smem, size = 0x4, offset = 0x4, fixed_abs, tag = 'smem constant byte address 0x4 - core index']
  #allocation1 [shape = 'u32[144,128]{1,0:T(1,128)}', space=vmem, size = 0x12000, scoped, tag = 'internal scratch']
  %s0 = inlined_call_operand.hbm [shape: f32[32,64], index: 0, kind: input, shape index: {}]
  %s1 = inlined_call_operand.hbm [shape: f32[3,64,128], index: 1, kind: input, shape index: {}]
  %s2 = inlined_call_operand.vmem [shape: f32[1,128], index: 2, kind: input, shape index: {}]
  %s3 = inlined_call_operand.hbm [shape: f32[32,128], index: 3, kind: output, shape index: {}]
  %s4 = sld [smem:[#allocation0]]
  $region30: #{tpu_custom_call.1} parent=0
    _
  %s6 = ssub.s32 1, %s4
  %s7 = scalar_select 0, %s6, %s4
  $region1: #{tpu_custom_call.1} parent=0
    #allocation2 [shape = 'u8[16384]{0}', space=vmem, size = 0x4000, scoped, tag = 'input window, operand 0, single buffered']
    #allocation3 [shape = 's32[1]{0}', space=sflag, size = 0x4, scoped, tag = 'scoped memory for tpu_custom_call.1']
    #allocation4 [shape = 's32[1]{0}', space=sflag, size = 0x4, scoped, tag = 'scoped memory for tpu_custom_call.1']
    #allocation5 [shape = 'u8[98304]{0}', space=vmem, size = 0x18000, scoped, tag = 'input window, operand 1, single buffered']
    #allocation6 [shape = 's32[1]{0}', space=sflag, size = 0x4, scoped, tag = 'scoped memory for tpu_custom_call.1']
    #allocation7 [shape = 'u8[16384]{0}', space=vmem, size = 0x4000, scoped, tag = 'output window, operand 0, single buffered']
    %8 = vsyncpa [#allocation3], 0
    %9 = vsyncpa [#allocation6], 0
    %10 = vsyncpa [#allocation4], 0
    // Predicated region
    $region2: #{tpu_custom_call.1} parent=1 // pred_check
      _
    $region3: #{tpu_custom_call.1} parent=1 // pred_check_branch
      %12 = sbr.rel (0) target = $region5
    $region4: #{tpu_custom_call.1} parent=1 // pred_region
      %s14 = ssub.s32 512, 512
      %15 = vsyncadd [#allocation3], %s14
      %s16 = sshll.u32 [#allocation2], 4
      %s17 = int_to_ptr.vmem [resolvable:$true] %s16
      %22 = dma.hbm_to_vmem [thread:$0]  %s0, 512, %s17, [#allocation3], 128, 128, 8
    $region5: #{tpu_custom_call.1} parent=1 // pred_fallthru
      _
    // Predicated region
    $region6: #{tpu_custom_call.1} parent=1 // pred_check
      _
    $region7: #{tpu_custom_call.1} parent=1 // pred_check_branch
      %24 = sbr.rel (0) target = $region9
    $region8: #{tpu_custom_call.1} parent=1 // pred_region
      %s26 = ssub.s32 3072, 3072
      %27 = vsyncadd [#allocation6], %s26
      %s28 = sshll.u32 [#allocation5], 4
      %s29 = int_to_ptr.vmem [resolvable:$true] %s28
      %34 = dma.hbm_to_vmem [thread:$0]  %s1, 3072, %s29, [#allocation6], 128, 128, 8
    $region9: #{tpu_custom_call.1} parent=1 // pred_fallthru
      _
    // Predicated region
    $region10: #{tpu_custom_call.1} parent=1 // pred_check
      _
    $region11: #{tpu_custom_call.1} parent=1 // pred_check_branch
      %36 = sbr.rel (0) target = $region13
    $region12: #{tpu_custom_call.1} parent=1 // pred_region
      _
    $region13: #{tpu_custom_call.1} parent=1 // pred_fallthru
      _
    // Predicated region
    $region14: #{tpu_custom_call.1} parent=1 // pred_check
      _
    $region15: #{tpu_custom_call.1} parent=1 // pred_check_branch
      %38 = sbr.rel (0) target = $region17
    $region16: #{tpu_custom_call.1} parent=1 // pred_region
      %39 = dma.done [#allocation3], 512
    $region17: #{tpu_custom_call.1} parent=1 // pred_fallthru
      _
    // Predicated region
    $region18: #{tpu_custom_call.1} parent=1 // pred_check
      _
    $region19: #{tpu_custom_call.1} parent=1 // pred_check_branch
      %41 = sbr.rel (0) target = $region21
    $region20: #{tpu_custom_call.1} parent=1 // pred_region
      %42 = dma.done [#allocation6], 3072
    $region21: #{tpu_custom_call.1} parent=1 // pred_fallthru
      _
    %v43 = vld [vmem:[#allocation2] sm:$0xff]
    %v44 = vld [vmem:[#allocation2 + $0x8] sm:$0xff]
    %v45 = vld [vmem:[#allocation2 + $0x10] sm:$0xff]
    %v46 = vld [vmem:[#allocation2 + $0x18] sm:$0xff]
    %v47 = vlaneseq
    %v48 = vshrl.u32 %v47, 7
    %v49 = vadd.s32 %v48, 8
    %v50 = vadd.s32 %v48, 16
    %v51 = vadd.s32 %v48, 24
    %vm56 = vcmask 1040384
    %v57 = vrot.slane %v43, 7
    %v58 = vrot.slane %v44, 7
    %v59 = vsel %vm56, %v57, %v58
    %v60 = vrot.slane %v45, 7
    %v61 = vsel %vm56, %v58, %v60
    %v62 = vrot.slane %v46, 7
    %v63 = vsel %vm56, %v60, %v62
    %v68 = vsel %vm56, 0.0, %v57
    %vm69 = vcmask 1046528
    %v70 = vrot.slane %v43, 1
    %v71 = vrot.slane %v44, 1
    %v72 = vsel %vm69, %v70, %v71
    %v73 = vrot.slane %v45, 1
    %v74 = vsel %vm69, %v71, %v73
    %v75 = vrot.slane %v46, 1
    %v76 = vsel %vm69, %v73, %v75
    %v81 = vsel %vm69, %v75, 0.0
    %vm82 = vcmp.lt.s32.totalorder %v48, 0
    %v83 = vsub.s32 0, %v48
    %v84 = vsel %vm82, %v83, %v48
    %v85 = vshrl.u32 %v84, 4
    %v86 = vand.u32 %v84, 15
    %v87 = vsub.s32 0, %v86
    %v88 = vsel %vm82, %v87, %v86
    %vm89 = vcmp.lt.s32.totalorder %v49, 0
    %v90 = vsub.s32 0, %v49
    %v91 = vsel %vm89, %v90, %v49
    %v92 = vshrl.u32 %v91, 4
    %v93 = vand.u32 %v91, 15
    %v94 = vsub.s32 0, %v93
    %v95 = vsel %vm89, %v94, %v93
    %vm96 = vcmp.lt.s32.totalorder %v50, 0
    %v97 = vsub.s32 0, %v50
    %v98 = vsel %vm96, %v97, %v50
    %v99 = vshrl.u32 %v98, 4
    %v100 = vand.u32 %v98, 15
    %v101 = vsub.s32 0, %v100
    %v102 = vsel %vm96, %v101, %v100
    %vm103 = vcmp.lt.s32.totalorder %v51, 0
    %v104 = vsub.s32 0, %v51
    %v105 = vsel %vm103, %v104, %v51
    %v106 = vshrl.u32 %v105, 4
    %v107 = vand.u32 %v105, 15
    %v108 = vsub.s32 0, %v107
    %v109 = vsel %vm103, %v108, %v107
    %vm110 = vcmp.ne.s32.totalorder %v88, 0
    %vm111 = vcmp.ne.s32.totalorder %v95, 0
    %vm112 = vcmp.ne.s32.totalorder %v102, 0
    %vm113 = vcmp.ne.s32.totalorder %v109, 0
    %vm114 = vcmp.lt.s32.totalorder %v88, 0
    %vm115 = vcmp.lt.s32.totalorder %v95, 0
    %vm116 = vcmp.lt.s32.totalorder %v102, 0
    %vm117 = vcmp.lt.s32.totalorder %v109, 0
    %vm118 = vmand %vm114, %vm110
    %vm119 = vmand %vm115, %vm111
    %vm120 = vmand %vm116, %vm112
    %vm121 = vmand %vm117, %vm113
    %v122 = vadd.s32 %v88, 16
    %v123 = vadd.s32 %v95, 16
    %v124 = vadd.s32 %v102, 16
    %v125 = vadd.s32 %v109, 16
    %v126 = vsel %vm118, %v122, %v88
    %v127 = vsel %vm119, %v123, %v95
    %v128 = vsel %vm120, %v124, %v102
    %v129 = vsel %vm121, %v125, %v109
    %vm130 = vcmp.eq.s32.totalorder %v126, 0
    %vm131 = vcmp.eq.s32.totalorder %v127, 0
    %vm132 = vcmp.eq.s32.totalorder %v128, 0
    %vm133 = vcmp.eq.s32.totalorder %v129, 0
    %v134 = vsel %vm130, 0.0, %v68
    %v135 = vsel %vm131, 0.0, %v59
    %v136 = vsel %vm132, 0.0, %v61
    %v137 = vsel %vm133, 0.0, %v63
    %vm138 = vcmp.eq.s32.totalorder %v126, 15
    %vm139 = vcmp.eq.s32.totalorder %v127, 15
    %vm140 = vcmp.eq.s32.totalorder %v128, 15
    %vm141 = vcmp.eq.s32.totalorder %v129, 15
    %v142 = vsel %vm138, 0.0, %v72
    %v143 = vsel %vm139, 0.0, %v74
    %v144 = vsel %vm140, 0.0, %v76
    %v145 = vsel %vm141, 0.0, %v81
    %v146 = vld [vmem:[#allocation5] sm:$0xff]
    %v147 = vld [vmem:[#allocation5 + $0x8] sm:$0xff]
    %v148 = vld [vmem:[#allocation5 + $0x10] sm:$0xff]
    %v149 = vld [vmem:[#allocation5 + $0x18] sm:$0xff]
    %v150 = vld [vmem:[#allocation5 + $0x20] sm:$0xff]
    %v151 = vld [vmem:[#allocation5 + $0x28] sm:$0xff]
    %v152 = vld [vmem:[#allocation5 + $0x30] sm:$0xff]
    %v153 = vld [vmem:[#allocation5 + $0x38] sm:$0xff]
    %s154 = scalar_lea.vmem [#allocation5], 64
    %v155 = vld [vmem:[%s154] sm:$0xff]
    %v156 = vld [vmem:[%s154 + $0x8] sm:$0xff]
    %v157 = vld [vmem:[%s154 + $0x10] sm:$0xff]
    %v158 = vld [vmem:[%s154 + $0x18] sm:$0xff]
    %v159 = vld [vmem:[%s154 + $0x20] sm:$0xff]
    %v160 = vld [vmem:[%s154 + $0x28] sm:$0xff]
    %v161 = vld [vmem:[%s154 + $0x30] sm:$0xff]
    %v162 = vld [vmem:[%s154 + $0x38] sm:$0xff]
    %vm163 = vcmask 523264
    %v164 = vsel %vm163, %v43, 0
    %v166 = vsel %vm163, %v44, 0
    %v168 = vsel %vm163, %v45, 0
    %v170 = vsel %vm163, %v46, 0
    %172 = vmatprep.subr.mxu0 0.0
    %173 = vmatpush1.msra.mxu0 %v155
    %174 = vmatprep.subr.mxu0 0.0
    %175 = vmatpush1.msra.mxu0 %v156
    %176 = vmatprep.subr.mxu0 0.0
    %177 = vmatpush1.msra.mxu0 %v157
    %178 = vmatprep.subr.mxu0 0.0
    %179 = vmatpush1.msra.mxu0 %v158
    %180 = vmatprep.subr.mxu0 0.0
    %181 = vmatpush1.msra.mxu0 %v159
    %182 = vmatprep.subr.mxu0 0.0
    %183 = vmatpush1.msra.mxu0 %v160
    %184 = vmatprep.subr.mxu0 0.0
    %185 = vmatpush1.msra.mxu0 %v161
    %186 = vmatprep.subr.mxu0 0.0
    %187 = vmatpush1.msra.mxu0 %v162
    %188 = vmatprep.subr.mxu0 0.0
    %189 = vmatpush1.msra.mxu0 0.0
    %190 = vmatprep.subr.mxu0 0.0
    %191 = vmatpush1.msra.mxu0 0.0
    %192 = vmatprep.subr.mxu0 0.0
    %193 = vmatpush1.msra.mxu0 0.0
    %194 = vmatprep.subr.mxu0 0.0
    %195 = vmatpush1.msra.mxu0 0.0
    %196 = vmatprep.subr.mxu0 0.0
    %197 = vmatpush1.msra.mxu0 0.0
    %198 = vmatprep.subr.mxu0 0.0
    %199 = vmatpush1.msra.mxu0 0.0
    %200 = vmatprep.subr.mxu0 0.0
    %201 = vmatpush1.msra.mxu0 0.0
    %202 = vmatprep.subr.mxu0 0.0
    %203 = vmatpush1.msra.mxu0 0.0
    %204 = vmatprep.subr.mxu0 0.0
    %205 = vmatpush1.msra.mxu0 0.0
    %206 = vmatprep.subr.mxu0 0.0
    %207 = vmatpush1.msra.mxu0 0.0
    %208 = vmatprep.subr.mxu0 0.0
    %209 = vmatpush1.msra.mxu0 0.0
    %210 = vmatprep.subr.mxu0 0.0
    %211 = vmatpush1.msra.mxu0 0.0
    %212 = vmatprep.subr.mxu0 0.0
    %213 = vmatpush1.msra.mxu0 0.0
    %214 = vmatprep.subr.mxu0 0.0
    %215 = vmatpush1.msra.mxu0 0.0
    %216 = vmatprep.subr.mxu0 0.0
    %217 = vmatpush1.msra.mxu0 0.0
    %218 = vmatprep.subr.mxu0 0.0
    %219 = vmatpush1.msra.mxu0 0.0
    %220 = vmatprep.subr.mxu0 0.0
    %221 = vmatpush1.msra.mxu0 0.0
    %222 = vmatprep.subr.mxu0 0.0
    %223 = vmatpush1.msra.mxu0 0.0
    %224 = vmatprep.subr.mxu0 0.0
    %225 = vmatpush1.msra.mxu0 0.0
    %226 = vmatprep.subr.mxu0 0.0
    %227 = vmatpush1.msra.mxu0 0.0
    %228 = vmatprep.subr.mxu0 0.0
    %229 = vmatpush1.msra.mxu0 0.0
    %230 = vmatprep.subr.mxu0 0.0
    %231 = vmatpush1.msra.mxu0 0.0
    %232 = vmatprep.subr.mxu0 0.0
    %233 = vmatpush1.msra.mxu0 0.0
    %234 = vmatprep.subr.mxu0 0.0
    %235 = vmatpush1.msra.mxu0 0.0
    %236 = vmatprep.mubr.f32.mxu0 0.0
    %237 = vmatmul.mubr.f32.gmra.mrb[0].mxu0 %v164
    %v238 = vpop.f32.mrb[0].mxu0
    %v239 = vadd.f32 0.0, %v238
    %v240 = vpop.f32.mrb[0].mxu0
    %241 = vmatprep.mubr.f32.mxu0 0.0
    %242 = vmatmul.mubr.f32.gmra.mrb[0].mxu0 %v166
    %v243 = vpop.f32.mrb[0].mxu0
    %v244 = vadd.f32 0.0, %v243
    %v245 = vpop.f32.mrb[0].mxu0
    %246 = vmatprep.mubr.f32.mxu0 0.0
    %247 = vmatmul.mubr.f32.gmra.mrb[0].mxu0 %v168
    %v248 = vpop.f32.mrb[0].mxu0
    %v249 = vadd.f32 0.0, %v248
    %v250 = vpop.f32.mrb[0].mxu0
    %251 = vmatprep.mubr.f32.mxu0 0.0
    %252 = vmatmul.mubr.f32.gmra.mrb[0].mxu0 %v170
    %v253 = vpop.f32.mrb[0].mxu0
    %v254 = vadd.f32 0.0, %v253
    %v255 = vpop.f32.mrb[0].mxu0
    %256 = vdwg.mxu0
    %v258 = vsel %vm163, %v134, 0
    %v261 = vsel %vm163, %v135, 0
    %v264 = vsel %vm163, %v136, 0
    %v267 = vsel %vm163, %v137, 0
    %269 = vmatprep.subr.mxu0 0.0
    %270 = vmatpush1.msra.mxu0 %v146
    %271 = vmatprep.subr.mxu0 0.0
    %272 = vmatpush1.msra.mxu0 %v147
    %273 = vmatprep.subr.mxu0 0.0
    %274 = vmatpush1.msra.mxu0 %v148
    %275 = vmatprep.subr.mxu0 0.0
    %276 = vmatpush1.msra.mxu0 %v149
    %277 = vmatprep.subr.mxu0 0.0
    %278 = vmatpush1.msra.mxu0 %v150
    %279 = vmatprep.subr.mxu0 0.0
    %280 = vmatpush1.msra.mxu0 %v151
    %281 = vmatprep.subr.mxu0 0.0
    %282 = vmatpush1.msra.mxu0 %v152
    %283 = vmatprep.subr.mxu0 0.0
    %284 = vmatpush1.msra.mxu0 %v153
    %285 = vmatprep.subr.mxu0 0.0
    %286 = vmatpush1.msra.mxu0 0.0
    %287 = vmatprep.subr.mxu0 0.0
    %288 = vmatpush1.msra.mxu0 0.0
    %289 = vmatprep.subr.mxu0 0.0
    %290 = vmatpush1.msra.mxu0 0.0
    %291 = vmatprep.subr.mxu0 0.0
    %292 = vmatpush1.msra.mxu0 0.0
    %293 = vmatprep.subr.mxu0 0.0
    %294 = vmatpush1.msra.mxu0 0.0
    %295 = vmatprep.subr.mxu0 0.0
    %296 = vmatpush1.msra.mxu0 0.0
    %297 = vmatprep.subr.mxu0 0.0
    %298 = vmatpush1.msra.mxu0 0.0
    %299 = vmatprep.subr.mxu0 0.0
    %300 = vmatpush1.msra.mxu0 0.0
    %301 = vmatprep.subr.mxu0 0.0
    %302 = vmatpush1.msra.mxu0 0.0
    %303 = vmatprep.subr.mxu0 0.0
    %304 = vmatpush1.msra.mxu0 0.0
    %305 = vmatprep.subr.mxu0 0.0
    %306 = vmatpush1.msra.mxu0 0.0
    %307 = vmatprep.subr.mxu0 0.0
    %308 = vmatpush1.msra.mxu0 0.0
    %309 = vmatprep.subr.mxu0 0.0
    %310 = vmatpush1.msra.mxu0 0.0
    %311 = vmatprep.subr.mxu0 0.0
    %312 = vmatpush1.msra.mxu0 0.0
    %313 = vmatprep.subr.mxu0 0.0
    %314 = vmatpush1.msra.mxu0 0.0
    %315 = vmatprep.subr.mxu0 0.0
    %316 = vmatpush1.msra.mxu0 0.0
    %317 = vmatprep.subr.mxu0 0.0
    %318 = vmatpush1.msra.mxu0 0.0
    %319 = vmatprep.subr.mxu0 0.0
    %320 = vmatpush1.msra.mxu0 0.0
    %321 = vmatprep.subr.mxu0 0.0
    %322 = vmatpush1.msra.mxu0 0.0
    %323 = vmatprep.subr.mxu0 0.0
    %324 = vmatpush1.msra.mxu0 0.0
    %325 = vmatprep.subr.mxu0 0.0
    %326 = vmatpush1.msra.mxu0 0.0
    %327 = vmatprep.subr.mxu0 0.0
    %328 = vmatpush1.msra.mxu0 0.0
    %329 = vmatprep.subr.mxu0 0.0
    %330 = vmatpush1.msra.mxu0 0.0
    %331 = vmatprep.subr.mxu0 0.0
    %332 = vmatpush1.msra.mxu0 0.0
    %333 = vmatprep.mubr.f32.mxu0 0.0
    %334 = vmatmul.mubr.f32.gmra.mrb[0].mxu0 %v258
    %v335 = vpop.f32.mrb[0].mxu0
    %v336 = vadd.f32 %v239, %v335
    %v337 = vpop.f32.mrb[0].mxu0
    %338 = vmatprep.mubr.f32.mxu0 0.0
    %339 = vmatmul.mubr.f32.gmra.mrb[0].mxu0 %v261
    %v340 = vpop.f32.mrb[0].mxu0
    %v341 = vadd.f32 %v244, %v340
    %v342 = vpop.f32.mrb[0].mxu0
    %343 = vmatprep.mubr.f32.mxu0 0.0
    %344 = vmatmul.mubr.f32.gmra.mrb[0].mxu0 %v264
    %v345 = vpop.f32.mrb[0].mxu0
    %v346 = vadd.f32 %v249, %v345
    %v347 = vpop.f32.mrb[0].mxu0
    %348 = vmatprep.mubr.f32.mxu0 0.0
    %349 = vmatmul.mubr.f32.gmra.mrb[0].mxu0 %v267
    %v350 = vpop.f32.mrb[0].mxu0
    %v351 = vadd.f32 %v254, %v350
    %v352 = vpop.f32.mrb[0].mxu0
    %353 = vdwg.mxu0
    %s354 = scalar_lea.vmem [#allocation5], 128
    %v355 = vld [vmem:[%s354] sm:$0xff]
    %v356 = vld [vmem:[%s354 + $0x8] sm:$0xff]
    %v357 = vld [vmem:[%s354 + $0x10] sm:$0xff]
    %v358 = vld [vmem:[%s354 + $0x18] sm:$0xff]
    %v359 = vld [vmem:[%s354 + $0x20] sm:$0xff]
    %v360 = vld [vmem:[%s354 + $0x28] sm:$0xff]
    %v361 = vld [vmem:[%s354 + $0x30] sm:$0xff]
    %v362 = vld [vmem:[%s354 + $0x38] sm:$0xff]
    %v364 = vsel %vm163, %v142, 0
    %v367 = vsel %vm163, %v143, 0
    %v370 = vsel %vm163, %v144, 0
    %v373 = vsel %vm163, %v145, 0
    %375 = vmatprep.subr.mxu0 0.0
    %376 = vmatpush1.msra.mxu0 %v355
    %377 = vmatprep.subr.mxu0 0.0
    %378 = vmatpush1.msra.mxu0 %v356
    %379 = vmatprep.subr.mxu0 0.0
    %380 = vmatpush1.msra.mxu0 %v357
    %381 = vmatprep.subr.mxu0 0.0
    %382 = vmatpush1.msra.mxu0 %v358
    %383 = vmatprep.subr.mxu0 0.0
    %384 = vmatpush1.msra.mxu0 %v359
    %385 = vmatprep.subr.mxu0 0.0
    %386 = vmatpush1.msra.mxu0 %v360
    %387 = vmatprep.subr.mxu0 0.0
    %388 = vmatpush1.msra.mxu0 %v361
    %389 = vmatprep.subr.mxu0 0.0
    %390 = vmatpush1.msra.mxu0 %v362
    %391 = vmatprep.subr.mxu0 0.0
    %392 = vmatpush1.msra.mxu0 0.0
    %393 = vmatprep.subr.mxu0 0.0
    %394 = vmatpush1.msra.mxu0 0.0
    %395 = vmatprep.subr.mxu0 0.0
    %396 = vmatpush1.msra.mxu0 0.0
    %397 = vmatprep.subr.mxu0 0.0
    %398 = vmatpush1.msra.mxu0 0.0
    %399 = vmatprep.subr.mxu0 0.0
    %400 = vmatpush1.msra.mxu0 0.0
    %401 = vmatprep.subr.mxu0 0.0
    %402 = vmatpush1.msra.mxu0 0.0
    %403 = vmatprep.subr.mxu0 0.0
    %404 = vmatpush1.msra.mxu0 0.0
    %405 = vmatprep.subr.mxu0 0.0
    %406 = vmatpush1.msra.mxu0 0.0
    %407 = vmatprep.subr.mxu0 0.0
    %408 = vmatpush1.msra.mxu0 0.0
    %409 = vmatprep.subr.mxu0 0.0
    %410 = vmatpush1.msra.mxu0 0.0
    %411 = vmatprep.subr.mxu0 0.0
    %412 = vmatpush1.msra.mxu0 0.0
    %413 = vmatprep.subr.mxu0 0.0
    %414 = vmatpush1.msra.mxu0 0.0
    %415 = vmatprep.subr.mxu0 0.0
    %416 = vmatpush1.msra.mxu0 0.0
    %417 = vmatprep.subr.mxu0 0.0
    %418 = vmatpush1.msra.mxu0 0.0
    %419 = vmatprep.subr.mxu0 0.0
    %420 = vmatpush1.msra.mxu0 0.0
    %421 = vmatprep.subr.mxu0 0.0
    %422 = vmatpush1.msra.mxu0 0.0
    %423 = vmatprep.subr.mxu0 0.0
    %424 = vmatpush1.msra.mxu0 0.0
    %425 = vmatprep.subr.mxu0 0.0
    %426 = vmatpush1.msra.mxu0 0.0
    %427 = vmatprep.subr.mxu0 0.0
    %428 = vmatpush1.msra.mxu0 0.0
    %429 = vmatprep.subr.mxu0 0.0
    %430 = vmatpush1.msra.mxu0 0.0
    %431 = vmatprep.subr.mxu0 0.0
    %432 = vmatpush1.msra.mxu0 0.0
    %433 = vmatprep.subr.mxu0 0.0
    %434 = vmatpush1.msra.mxu0 0.0
    %435 = vmatprep.subr.mxu0 0.0
    %436 = vmatpush1.msra.mxu0 0.0
    %437 = vmatprep.subr.mxu0 0.0
    %438 = vmatpush1.msra.mxu0 0.0
    %439 = vmatprep.mubr.f32.mxu0 0.0
    %440 = vmatmul.mubr.f32.gmra.mrb[0].mxu0 %v364
    %v441 = vpop.f32.mrb[0].mxu0
    %v442 = vadd.f32 0.0, %v441
    %v443 = vpop.f32.mrb[0].mxu0
    %444 = vmatprep.mubr.f32.mxu0 0.0
    %445 = vmatmul.mubr.f32.gmra.mrb[0].mxu0 %v367
    %v446 = vpop.f32.mrb[0].mxu0
    %v447 = vadd.f32 0.0, %v446
    %v448 = vpop.f32.mrb[0].mxu0
    %449 = vmatprep.mubr.f32.mxu0 0.0
    %450 = vmatmul.mubr.f32.gmra.mrb[0].mxu0 %v370
    %v451 = vpop.f32.mrb[0].mxu0
    %v452 = vadd.f32 0.0, %v451
    %v453 = vpop.f32.mrb[0].mxu0
    %454 = vmatprep.mubr.f32.mxu0 0.0
    %455 = vmatmul.mubr.f32.gmra.mrb[0].mxu0 %v373
    %v456 = vpop.f32.mrb[0].mxu0
    %v457 = vadd.f32 0.0, %v456
    %v458 = vpop.f32.mrb[0].mxu0
    %459 = vdwg.mxu0
    %v460 = vadd.f32 %v336, %v442
    %v461 = vadd.f32 %v341, %v447
    %v462 = vadd.f32 %v346, %v452
    %v463 = vadd.f32 %v351, %v457
    %v464 = vld [vmem:[%s2] sm:$0x1]
    %v466 = vlaneseq
    %v467 = vshrl.u32 %v466, 7
    %v468 = vsub.s32 0, %v467
    %v469 = vrot.slane %v464, %v468
    %v471 = vadd.f32 %v460, %v469
    %v472 = vadd.f32 %v461, %v469
    %v473 = vadd.f32 %v462, %v469
    %v474 = vadd.f32 %v463, %v469
    %v475 = vmax.f32 %v471, 0.0
    %v476 = vmax.f32 %v472, 0.0
    %v477 = vmax.f32 %v473, 0.0
    %v478 = vmax.f32 %v474, 0.0
    %479 = vst [vmem:[#allocation7] sm:$0xff] %v475
    %480 = vst [vmem:[#allocation7 + $0x8] sm:$0xff] %v476
    %481 = vst [vmem:[#allocation7 + $0x10] sm:$0xff] %v477
    %482 = vst [vmem:[#allocation7 + $0x18] sm:$0xff] %v478
    // Predicated region
    $region22: #{tpu_custom_call.1} parent=1 // pred_check
      _
    $region23: #{tpu_custom_call.1} parent=1 // pred_check_branch
      %484 = sbr.rel (0) target = $region25
    $region24: #{tpu_custom_call.1} parent=1 // pred_region
      %s486 = ssub.s32 512, 512
      %487 = vsyncadd [#allocation4], %s486
      %s488 = sshll.u32 [#allocation7], 4
      %s489 = int_to_ptr.vmem [resolvable:$true] %s488
      %494 = dma.vmem_to_hbm [thread:$0]  %s489, 512, %s3, [#allocation4], 128, 128, 8
    $region25: #{tpu_custom_call.1} parent=1 // pred_fallthru
      _
    // Predicated region
    $region26: #{tpu_custom_call.1} parent=1 // pred_check
      _
    $region27: #{tpu_custom_call.1} parent=1 // pred_check_branch
      %496 = sbr.rel (0) target = $region29
    $region28: #{tpu_custom_call.1} parent=1 // pred_region
      %497 = dma.done [#allocation4], 512
    $region29: #{tpu_custom_call.1} parent=1 // pred_fallthru
      _
    %498 = vsyncpa [#allocation3], 1
    %499 = vsyncpa [#allocation6], 1
    %500 = vsyncpa [#allocation4], 1

</llo_original>
